<compile_context>
chip_gen: v5e
topology: v5e:2x2
jax: 0.10.0
libtpu: 0.0.40
codegen_flags: <defaults>
</compile_context>

<pallas_src>
import functools

import jax
import jax.numpy as jnp
from jax import lax
from jax.experimental import pallas as pl
from jax.experimental.pallas import tpu as pltpu


def _kl_kernel(p_ref, q_ref, o_ref, *, n_rows, tile_rows, mask_last):
    pid = pl.program_id(0)

    p_logit = p_ref[...].astype(jnp.float32)   # (TM, C)
    q_logit = q_ref[...].astype(jnp.float32)   # (TM, C)

    # Numerically-stable shift along the lane (class) axis.
    p_sh = p_logit - jnp.max(p_logit, axis=-1, keepdims=True)
    q_sh = q_logit - jnp.max(q_logit, axis=-1, keepdims=True)

    # Only two full-size transcendental passes; e_p is reused below.
    e_p = jnp.exp(p_sh)                                            # (TM, C)
    sum_e_p = jnp.sum(e_p, axis=-1, keepdims=True)                 # (TM, 1)
    sum_e_q = jnp.sum(jnp.exp(q_sh), axis=-1, keepdims=True)       # (TM, 1)

    # log_p - log_q = (p_sh - q_sh) - (log(sum_e_p) - log(sum_e_q));
    # the logs only touch (TM, 1) vectors.
    lse_diff = jnp.log(sum_e_p) - jnp.log(sum_e_q)                 # (TM, 1)

    # softmax(p) reuses e_p (no third exp pass). Exact reciprocal on a (TM, 1)
    # vector keeps the result within ~1 ulp of the reference
    # (pl.reciprocal(approx=True) would cost accuracy for no real gain here).
    probs = e_p * (1.0 / sum_e_p)                                  # (TM, C)

    # Per-row KL with the product fused directly into the reduction
    # (no extra (TM, C) temporaries).
    kl_row = jnp.sum(probs * ((p_sh - q_sh) - lse_diff),
                     axis=-1, keepdims=True)                       # (TM, 1)

    if mask_last:
        row_idx = pid * tile_rows + lax.broadcasted_iota(
            jnp.int32, (tile_rows, 1), 0)
        kl_row = jnp.where(row_idx < n_rows, kl_row, 0.0)

    tile_sum = jnp.sum(kl_row)
    # Write the partial into an (8,128)-aligned output block so stores stay
    # layout-legal; the wrapper reads element [0, 0] of each tile.
    o_ref[...] = jnp.full(o_ref.shape, tile_sum, dtype=jnp.float32)


def _choose_tile_rows(n, c, dtype, vmem_tile_budget_bytes=24 * 1024 * 1024):
    """Pick TM so 2 inputs x 2 pipeline buffers + ~5 live (TM,C) f32 temps fit
    a conservative VMEM budget (also valid on v7x's 64 MiB VMEM)."""
    in_bytes = jnp.dtype(dtype).itemsize
    bytes_per_row = c * (2 * 2 * in_bytes + 5 * 4)
    tm = max(8, vmem_tile_budget_bytes // max(bytes_per_row, 1))
    tm = int(min(tm, 1024))
    if tm >= n:
        return n                            # full-dim block: always legal
    mult = 16 if in_bytes == 2 else 8       # bf16 packs 2 rows per sublane
    return max(mult, (tm // mult) * mult)


def kl_loss(p_logit: jax.Array, q_logit: jax.Array) -> jax.Array:
    """Scalar KL(p || q) averaged over batch, matching the PyTorch module."""
    assert p_logit.shape == q_logit.shape and p_logit.ndim == 2
    assert p_logit.dtype == q_logit.dtype
    n, c = p_logit.shape

    tm = _choose_tile_rows(n, c, p_logit.dtype)
    num_tiles = pl.cdiv(n, tm)
    mask_last = (n % tm) != 0

    kernel = functools.partial(
        _kl_kernel, n_rows=n, tile_rows=tm, mask_last=mask_last)

    partials = pl.pallas_call(
        kernel,
        out_shape=jax.ShapeDtypeStruct((num_tiles, 8, 128), jnp.float32),
        grid_spec=pltpu.PrefetchScalarGridSpec(
            num_scalar_prefetch=0,
            grid=(num_tiles,),
            in_specs=[
                pl.BlockSpec((tm, c), lambda i: (i, 0)),
                pl.BlockSpec((tm, c), lambda i: (i, 0)),
            ],
            out_specs=pl.BlockSpec((1, 8, 128), lambda i: (i, 0, 0)),
        ),
        compiler_params=pltpu.CompilerParams(
            dimension_semantics=("parallel",),
            vmem_limit_bytes=48 * 1024 * 1024,
        ),
    )(p_logit, q_logit)

    # Tiny epilogue: per-tile partials -> mean over the TRUE batch size N.
    return jnp.sum(partials[:, 0, 0]) / jnp.float32(n)


def _kl_loss_ref(p_logit, q_logit):
    # Pure-JAX reference for correctness check.
    log_p = jax.nn.log_softmax(p_logit.astype(jnp.float32), axis=-1)
    log_q = jax.nn.log_softmax(q_logit.astype(jnp.float32), axis=-1)
    p = jnp.exp(log_p)
    return jnp.mean(jnp.sum(p * (log_p - log_q), axis=1))


if __name__ == "__main__":
    key = jax.random.PRNGKey(0)
    k1, k2 = jax.random.split(key)
    batch, num_classes = 8, 32
    p_logit = jax.random.normal(k1, (batch, num_classes), dtype=jnp.float32)
    q_logit = jax.random.normal(k2, (batch, num_classes), dtype=jnp.float32)

    out = jax.block_until_ready(kl_loss(p_logit, q_logit))
    ref = _kl_loss_ref(p_logit, q_logit)
    assert jnp.allclose(out, ref, atol=1e-5, rtol=1e-5), (out, ref)
    print("KERNEL_OK")
</pallas_src>

<mosaic_0001>
module attributes {stable_mosaic.version = 11 : i64} {
  func.func @_kl_kernel(%arg0: i32, %arg1: memref<8x32xf32, #tpu.memory_space<vmem>>, %arg2: memref<8x32xf32, #tpu.memory_space<vmem>>, %arg3: memref<1x8x128xf32, #tpu.memory_space<vmem>>) attributes {dimension_semantics = [#tpu.dimension_semantics<parallel>], iteration_bounds = array<i64: 1>, scalar_prefetch = 0 : i64, scratch_operands = 0 : i64, tpu.core_type = #tpu.core_type<tc>, window_params = [{transform_indices = @transform_0, window_bounds = array<i64: 8, 32>}, {transform_indices = @transform_1, window_bounds = array<i64: 8, 32>}, {transform_indices = @transform_2, window_bounds = array<i64: 1, 8, 128>}]} {
    %c0 = arith.constant 0 : index
    %c0_0 = arith.constant 0 : index
    %0 = vector.load %arg1[%c0, %c0_0] : memref<8x32xf32, #tpu.memory_space<vmem>>, vector<8x32xf32>
    %c0_1 = arith.constant 0 : index
    %c0_2 = arith.constant 0 : index
    %1 = vector.load %arg2[%c0_1, %c0_2] : memref<8x32xf32, #tpu.memory_space<vmem>>, vector<8x32xf32>
    %cst = arith.constant dense<0xFF800000> : vector<8xf32>
    %2 = vector.multi_reduction <maximumf>, %0, %cst [1] : vector<8x32xf32> to vector<8xf32>
    %3 = vector.shape_cast %2 : vector<8xf32> to vector<8x1xf32>
    %4 = vector.broadcast %3 : vector<8x1xf32> to vector<8x32xf32>
    %5 = arith.subf %0, %4 : vector<8x32xf32>
    %cst_3 = arith.constant dense<0xFF800000> : vector<8xf32>
    %6 = vector.multi_reduction <maximumf>, %1, %cst_3 [1] : vector<8x32xf32> to vector<8xf32>
    %7 = vector.shape_cast %6 : vector<8xf32> to vector<8x1xf32>
    %8 = vector.broadcast %7 : vector<8x1xf32> to vector<8x32xf32>
    %9 = arith.subf %1, %8 : vector<8x32xf32>
    %10 = math.exp %5 : vector<8x32xf32>
    %cst_4 = arith.constant dense<0.000000e+00> : vector<8xf32>
    %11 = vector.multi_reduction <add>, %10, %cst_4 [1] : vector<8x32xf32> to vector<8xf32>
    %12 = vector.shape_cast %11 : vector<8xf32> to vector<8x1xf32>
    %13 = math.exp %9 : vector<8x32xf32>
    %cst_5 = arith.constant dense<0.000000e+00> : vector<8xf32>
    %14 = vector.multi_reduction <add>, %13, %cst_5 [1] : vector<8x32xf32> to vector<8xf32>
    %15 = vector.shape_cast %14 : vector<8xf32> to vector<8x1xf32>
    %16 = math.log %12 : vector<8x1xf32>
    %17 = math.log %15 : vector<8x1xf32>
    %18 = arith.subf %16, %17 : vector<8x1xf32>
    %cst_6 = arith.constant 1.000000e+00 : f32
    %19 = vector.broadcast %cst_6 : f32 to vector<8x1xf32>
    %20 = arith.divf %19, %12 : vector<8x1xf32>
    %21 = vector.broadcast %20 : vector<8x1xf32> to vector<8x32xf32>
    %22 = arith.mulf %10, %21 : vector<8x32xf32>
    %23 = arith.subf %5, %9 : vector<8x32xf32>
    %24 = vector.broadcast %18 : vector<8x1xf32> to vector<8x32xf32>
    %25 = arith.subf %23, %24 : vector<8x32xf32>
    %26 = arith.mulf %22, %25 : vector<8x32xf32>
    %cst_7 = arith.constant dense<0.000000e+00> : vector<8xf32>
    %27 = vector.multi_reduction <add>, %26, %cst_7 [1] : vector<8x32xf32> to vector<8xf32>
    %28 = vector.shape_cast %27 : vector<8xf32> to vector<8x1xf32>
    %29 = vector.shape_cast %28 : vector<8x1xf32> to vector<1x8x1xf32>
    %cst_8 = arith.constant dense<0.000000e+00> : vector<1xf32>
    %30 = vector.multi_reduction <add>, %29, %cst_8 [1, 2] : vector<1x8x1xf32> to vector<1xf32>
    %31 = vector.shape_cast %30 : vector<1xf32> to vector<1x1x1xf32>
    %32 = vector.extract %31[0, 0, 0] : f32 from vector<1x1x1xf32>
    %33 = vector.broadcast %32 : f32 to vector<1x8x128xf32>
    %c0_9 = arith.constant 0 : index
    %c0_10 = arith.constant 0 : index
    %c0_11 = arith.constant 0 : index
    %34 = vector.load %arg3[%c0_9, %c0_10, %c0_11] : memref<1x8x128xf32, #tpu.memory_space<vmem>>, vector<1x8x128xf32>
    tpu.vector_store %arg3[%c0_9, %c0_10, %c0_11], %33 {strides = array<i32>} : memref<1x8x128xf32, #tpu.memory_space<vmem>>, vector<1x8x128xf32>,
    return
  }
  func.func @transform_0(%arg0: i32) -> (i32, i32) {
    %c0_i32 = arith.constant 0 : i32
    %c0_i32_0 = arith.constant 0 : i32
    return %arg0, %c0_i32 : i32, i32
  }
  func.func @transform_1(%arg0: i32) -> (i32, i32) {
    %c0_i32 = arith.constant 0 : i32
    %c0_i32_0 = arith.constant 0 : i32
    return %arg0, %c0_i32 : i32, i32
  }
  func.func @transform_2(%arg0: i32) -> (i32, i32, i32) {
    %c0_i32 = arith.constant 0 : i32
    %c0_i32_0 = arith.constant 0 : i32
    %c0_i32_1 = arith.constant 0 : i32
    return %arg0, %c0_i32, %c0_i32_0 : i32, i32, i32
  }
}

</mosaic_0001>

<llo_original>
// kernel: tpu_custom_call.1
$region0: #{tpu_custom_call.1}
  #allocation0 [shape = 'u32[]', space=smem, size = 0x4, offset = 0x4, fixed_abs, tag = 'smem constant byte address 0x4 - core index']
  #allocation1 [shape = 'u32[72,128]{1,0:T(1,128)}', space=vmem, size = 0x9000, scoped, tag = 'internal scratch']
  %s0 = inlined_call_operand.hbm [shape: f32[8,32], index: 0, kind: input, shape index: {}]
  %s1 = inlined_call_operand.hbm [shape: f32[8,32], index: 1, kind: input, shape index: {}]
  %s2 = inlined_call_operand.hbm [shape: f32[1,8,128], index: 2, kind: output, shape index: {}]
  %s3 = sld [smem:[#allocation0]]
  $region26: #{tpu_custom_call.1} parent=0
    _
  %s5 = ssub.s32 1, %s3
  %s6 = scalar_select 0, %s5, %s3
  $region1: #{tpu_custom_call.1} parent=0
    #allocation2 [shape = 'u8[4096]{0}', space=vmem, size = 0x1000, scoped, tag = 'input window, operand 0, single buffered']
    #allocation3 [shape = 's32[1]{0}', space=sflag, size = 0x4, scoped, tag = 'scoped memory for tpu_custom_call.1']
    #allocation4 [shape = 's32[1]{0}', space=sflag, size = 0x4, scoped, tag = 'scoped memory for tpu_custom_call.1']
    #allocation5 [shape = 'u8[4096]{0}', space=vmem, size = 0x1000, scoped, tag = 'input window, operand 1, single buffered']
    #allocation6 [shape = 's32[1]{0}', space=sflag, size = 0x4, scoped, tag = 'scoped memory for tpu_custom_call.1']
    #allocation7 [shape = 'u8[4096]{0}', space=vmem, size = 0x1000, scoped, tag = 'output window, operand 0, single buffered']
    %7 = vsyncpa [#allocation3], 0
    %8 = vsyncpa [#allocation6], 0
    %9 = vsyncpa [#allocation4], 0
    // Predicated region
    $region2: #{tpu_custom_call.1} parent=1 // pred_check
      _
    $region3: #{tpu_custom_call.1} parent=1 // pred_check_branch
      %11 = sbr.rel (0) target = $region5
    $region4: #{tpu_custom_call.1} parent=1 // pred_region
      %13 = vsyncadd [#allocation3], 0
      %s15 = sshll.u32 %s0, 4
      %s16 = int_to_ptr.hbm [resolvable:$true] %s15
      %s17 = sshll.u32 [#allocation2], 4
      %s18 = int_to_ptr.vmem [resolvable:$true] %s17
      %20 = dma.hbm_to_vmem [thread:$0]  %s16, 128, %s18, [#allocation3]
    $region5: #{tpu_custom_call.1} parent=1 // pred_fallthru
      _
    // Predicated region
    $region6: #{tpu_custom_call.1} parent=1 // pred_check
      _
    $region7: #{tpu_custom_call.1} parent=1 // pred_check_branch
      %22 = sbr.rel (0) target = $region9
    $region8: #{tpu_custom_call.1} parent=1 // pred_region
      %24 = vsyncadd [#allocation6], 0
      %s26 = sshll.u32 %s1, 4
      %s27 = int_to_ptr.hbm [resolvable:$true] %s26
      %s28 = sshll.u32 [#allocation5], 4
      %s29 = int_to_ptr.vmem [resolvable:$true] %s28
      %31 = dma.hbm_to_vmem [thread:$0]  %s27, 128, %s29, [#allocation6]
    $region9: #{tpu_custom_call.1} parent=1 // pred_fallthru
      _
    // Predicated region
    $region10: #{tpu_custom_call.1} parent=1 // pred_check
      _
    $region11: #{tpu_custom_call.1} parent=1 // pred_check_branch
      %33 = sbr.rel (0) target = $region13
    $region12: #{tpu_custom_call.1} parent=1 // pred_region
      %35 = dma.done [#allocation3], 128
    $region13: #{tpu_custom_call.1} parent=1 // pred_fallthru
      _
    // Predicated region
    $region14: #{tpu_custom_call.1} parent=1 // pred_check
      _
    $region15: #{tpu_custom_call.1} parent=1 // pred_check_branch
      %37 = sbr.rel (0) target = $region17
    $region16: #{tpu_custom_call.1} parent=1 // pred_region
      %39 = dma.done [#allocation6], 128
    $region17: #{tpu_custom_call.1} parent=1 // pred_fallthru
      _
    %v40 = vld [vmem:[#allocation2] sm:$0xff]
    %v41 = vld [vmem:[#allocation5] sm:$0xff]
    %vm42 = vcmask 261120
    %v43 = vsel %vm42, %v40, -inf
    %44 = vmax.xlane.f32.xlu0 %v43
    %v45 = vpop.xlane.xlu0 %44
    %v46 = vsub.f32 %v40, %v45
    %v47 = vsel %vm42, %v41, -inf
    %48 = vmax.xlane.f32.xlu0 %v47
    %v49 = vpop.xlane.xlu0 %48
    %v50 = vsub.f32 %v41, %v49
    %v51 = vmul.f32 %v46, 1.442695
    %v52 = vpow.pop %v51
    %v53 = vsel %vm42, %v52, 0.0
    %54 = vadd.xlane.f32.xlu0 %v53
    %v55 = vpop.xlane.xlu0 %54
    %v56 = vmul.f32 %v50, 1.442695
    %v57 = vpow.pop %v56
    %v58 = vsel %vm42, %v57, 0.0
    %59 = vadd.xlane.f32.xlu0 %v58
    %v60 = vpop.xlane.xlu0 %59
    %v61 = vlog2.pop %v55
    %v62 = vmul.f32 %v61, 0.6931472
    %v63 = vlog2.pop %v60
    %v64 = vmul.f32 %v63, 0.6931472
    %v65 = vsub.f32 %v62, %v64
    %v66 = vrcp.pop %v55
    %v67 = vmul.f32 %v55, %v66
    %v68 = vsub.f32 1.0, %v67
    %v69 = vmul.f32 %v66, %v68
    %v70 = vadd.f32 %v66, %v69
    %vm71 = vweird.f32 %v55
    %vm72 = vweird.f32 %v66
    %vm73 = vmor %vm71, %vm72
    %v74 = vsel %vm73, %v66, %v70
    %v75 = vand.u32 2147483647, %v55
    %vm76 = vcmp.eq.f32.partialorder %v75, 8.507059e+37
    %v77 = vand.u32 %v55, 2147483648
    %v78 = vor.u32 1.1754944e-38, %v77
    %v79 = vsel %vm76, %v78, %v74
    %v80 = vmul.f32 1.0, %v79
    %v81 = vmul.f32 %v52, %v80
    %v82 = vsub.f32 %v46, %v50
    %v83 = vsub.f32 %v82, %v65
    %v84 = vmul.f32 %v81, %v83
    %v85 = vsel %vm42, %v84, 0.0
    %86 = vadd.xlane.f32.xlu0 %v85
    %v87 = vpop.xlane.xlu0 %86
    %vm88 = vcmask 7168
    %v89 = vsel %vm88, %v87, 0.0
    %90 = vadd.xlane.f32.xlu0 %v89
    %v91 = vpop.xlane.xlu0 %90
    %v92 = vrot.slane %v91, 4
    %v93 = vadd.f32 %v91, %v92
    %v94 = vrot.slane %v93, 2
    %v95 = vadd.f32 %v93, %v94
    %v96 = vrot.slane %v95, 1
    %v97 = vadd.f32 %v95, %v96
    %s98 = vtos %v97
    %v99 = vstv %s98
    %100 = vst [vmem:[#allocation7] sm:$0xff] %v99
    // Predicated region
    $region18: #{tpu_custom_call.1} parent=1 // pred_check
      _
    $region19: #{tpu_custom_call.1} parent=1 // pred_check_branch
      %102 = sbr.rel (0) target = $region21
    $region20: #{tpu_custom_call.1} parent=1 // pred_region
      %104 = vsyncadd [#allocation4], 0
      %s106 = sshll.u32 [#allocation7], 4
      %s107 = int_to_ptr.vmem [resolvable:$true] %s106
      %s108 = sshll.u32 %s2, 4
      %s109 = int_to_ptr.hbm [resolvable:$true] %s108
      %111 = dma.vmem_to_hbm [thread:$0]  %s107, 128, %s109, [#allocation4]
    $region21: #{tpu_custom_call.1} parent=1 // pred_fallthru
      _
    // Predicated region
    $region22: #{tpu_custom_call.1} parent=1 // pred_check
      _
    $region23: #{tpu_custom_call.1} parent=1 // pred_check_branch
      %113 = sbr.rel (0) target = $region25
    $region24: #{tpu_custom_call.1} parent=1 // pred_region
      %115 = dma.done [#allocation4], 128
    $region25: #{tpu_custom_call.1} parent=1 // pred_fallthru
      _
    %116 = vsyncpa [#allocation3], 1
    %117 = vsyncpa [#allocation6], 1
    %118 = vsyncpa [#allocation4], 1

</llo_original>
